<compile_context>
chip_gen: v5e
topology: v5e:2x2
jax: 0.10.0
libtpu: 0.0.40
codegen_flags: <defaults>
</compile_context>

<pallas_src>
import functools

import jax
import jax.numpy as jnp
from jax.experimental import pallas as pl
from jax.experimental.pallas import tpu as pltpu


# --------------------------------------------------------------------------
# Kernels
# --------------------------------------------------------------------------
def _mcl_kernel_direct(x_ref, w_ref, b_ref, o_ref):
    """f32 output: accumulate directly into the resident output block.

    The output BlockSpec ignores the K grid axis, so o_ref stays in VMEM
    across the reduction; init with the bias at k==0, then just +=.
    """
    k = pl.program_id(2)

    @pl.when(k == 0)
    def _():
        o_ref[...] = jnp.broadcast_to(b_ref[...].astype(o_ref.dtype), o_ref.shape)

    o_ref[...] += jnp.dot(
        x_ref[...], w_ref[...], preferred_element_type=jnp.float32
    )


def _mcl_kernel_scratch(x_ref, w_ref, b_ref, o_ref, acc_ref):
    """Non-f32 output: f32 VMEM accumulator + single epilogue cast/store."""
    k = pl.program_id(2)

    @pl.when(k == 0)
    def _():
        acc_ref[...] = jnp.zeros_like(acc_ref)

    acc_ref[...] += jnp.dot(
        x_ref[...], w_ref[...], preferred_element_type=jnp.float32
    )

    @pl.when(k == pl.num_programs(2) - 1)
    def _():
        o_ref[...] = (acc_ref[...] + b_ref[...].astype(jnp.float32)).astype(o_ref.dtype)


# --------------------------------------------------------------------------
# Tile / VMEM budgeting
# --------------------------------------------------------------------------
def _vmem_budget_bytes():
    """~5/8 of physical VMEM: 40 MiB on v7x (64 MiB/TC), 80 MiB on v5e/v6e."""
    try:
        cap = int(getattr(pltpu.get_tpu_info(), "vmem_capacity_bytes", 64 << 20))
    except Exception:  # pragma: no cover - conservative fallback
        cap = 64 << 20
    return (cap * 5) // 8


def _tile_options(dim, candidates):
    """Divisors of `dim` among candidates (descending); full extent always legal."""
    opts = {c for c in candidates if c <= dim and dim % c == 0}
    opts.add(dim)
    return sorted(opts, reverse=True)


def _select_tiles(B, N, K, x_bytes, w_bytes, o_bytes, budget, use_scratch):
    """Largest (TK first, then TN, then TM) config whose double-buffered
    footprint fits the VMEM budget.  256-multiples preferred (v6e/v7x MXU)."""
    tm_opts = _tile_options(B, (512, 256, 128, 64, 32, 16, 8))
    tn_opts = _tile_options(N, (2048, 1024, 512, 256, 128))
    tk_opts = _tile_options(K, (2048, 1024, 512, 256, 128))

    def footprint(tm, tn, tk):
        f = (2 * tm * tk * x_bytes        # double-buffered x tile
             + 2 * tk * tn * w_bytes      # double-buffered W tile
             + 2 * tm * tn * o_bytes      # double-buffered out tile
             + 2 * tn * 4)                # double-buffered bias tile (f32)
        if use_scratch:
            f += tm * tn * 4              # f32 accumulator scratch
        return f

    for tk in tk_opts:                    # maximize TK first (fewest acc RMW passes)
        for tn in tn_opts:
            for tm in tm_opts:
                if footprint(tm, tn, tk) <= budget:
                    return tm, tn, tk
    return tm_opts[-1], tn_opts[-1], tk_opts[-1]


# --------------------------------------------------------------------------
# Wrappers
# --------------------------------------------------------------------------
def prepare_params(weight, bias, compute_dtype=jnp.bfloat16):
    """One-time weight/bias re-layout (do this OUTSIDE the per-step hot path).

    W (Cin, Cout, Fin, Fout) -> (Cin, Fin, Cout, Fout) -> (K, N)   [bf16]
    bias (Cout, Fout)        -> (1, N)                              [f32]
    """
    Cin, Cout, Fin, Fout = weight.shape
    K, N = Cin * Fin, Cout * Fout
    w2 = jnp.transpose(weight, (0, 2, 1, 3)).reshape(K, N).astype(compute_dtype)
    b2 = bias.reshape(1, N).astype(jnp.float32)
    return w2, b2


def multichannel_linear_fused(x, w2, b2, n_channels_out, out_features, *,
                              compute_dtype=jnp.bfloat16,
                              tm=None, tn=None, tk=None):
    """Fused GEMM on pre-laid-out (K, N) weights + (1, N) bias."""
    B, Cin, Fin = x.shape
    K = Cin * Fin
    Kw, N = w2.shape
    assert Kw == K, (Kw, K)
    assert N == n_channels_out * out_features, (N, n_channels_out, out_features)

    out_dtype = x.dtype
    x2 = x.reshape(B, K).astype(compute_dtype)

    xb = jnp.dtype(x2.dtype).itemsize
    wb = jnp.dtype(w2.dtype).itemsize
    ob = jnp.dtype(out_dtype).itemsize
    direct_acc = out_dtype == jnp.float32

    budget = _vmem_budget_bytes()
    auto_tm, auto_tn, auto_tk = _select_tiles(
        B, N, K, xb, wb, ob, budget, use_scratch=not direct_acc)
    TM = tm if tm is not None else auto_tm
    TN = tn if tn is not None else auto_tn
    TK = tk if tk is not None else auto_tk

    # Tiles must evenly divide (no ragged K tail would be masked in-kernel)
    # and respect the (8, 128) layout rule.
    assert B % TM == 0 and (TM % 8 == 0 or TM == B), (B, TM)
    assert N % TN == 0 and (TN % 128 == 0 or TN == N), (N, TN)
    assert K % TK == 0 and (TK % 128 == 0 or TK == K), (K, TK)

    # Guarantee >= 2 steps on a parallel grid axis (keeps both v7x TCs busy;
    # the one extra grid step is negligible on 1-TC v5e/v6e).
    if tm is None and tn is None and (B // TM) * (N // TN) == 1:
        if TN >= 256 and (TN // 2) % 128 == 0:
            TN //= 2
        elif TM >= 16 and (TM // 2) % 8 == 0:
            TM //= 2

    grid = (B // TM, N // TN, K // TK)

    kernel = _mcl_kernel_direct if direct_acc else _mcl_kernel_scratch
    scratch = [] if direct_acc else [pltpu.VMEM((TM, TN), jnp.float32)]

    cost = pl.CostEstimate(
        flops=2 * B * K * N,
        transcendentals=0,
        bytes_accessed=B * K * xb + K * N * wb + N * 4 + B * N * ob,
    )

    out2 = pl.pallas_call(
        kernel,
        out_shape=jax.ShapeDtypeStruct((B, N), out_dtype),
        grid_spec=pltpu.PrefetchScalarGridSpec(
            num_scalar_prefetch=0,
            grid=grid,
            in_specs=[
                pl.BlockSpec((TM, TK), lambda i, j, k: (i, k)),   # x tile (bf16)
                pl.BlockSpec((TK, TN), lambda i, j, k: (k, j)),   # W tile (bf16)
                pl.BlockSpec((1, TN), lambda i, j, k: (0, j)),    # bias tile (f32)
            ],
            out_specs=pl.BlockSpec((TM, TN), lambda i, j, k: (i, j)),
            scratch_shapes=scratch,
        ),
        compiler_params=pltpu.CompilerParams(
            dimension_semantics=("parallel", "parallel", "arbitrary"),
            vmem_limit_bytes=int(budget),
        ),
        cost_estimate=cost,
    )(x2, w2, b2)

    # Free reshape back to the PyTorch output layout (no transpose needed).
    return out2.reshape(B, n_channels_out, out_features)


def multichannel_linear_forward(x, weight, bias, *, compute_dtype=jnp.bfloat16,
                                tm=None, tn=None, tk=None):
    """Convenience wrapper matching the PyTorch forward signature.
    For repeated calls, hoist prepare_params() out of the hot path yourself."""
    Cin, Cout, Fin, Fout = weight.shape
    w2, b2 = prepare_params(weight, bias, compute_dtype)
    return multichannel_linear_fused(x, w2, b2, Cout, Fout,
                                     compute_dtype=compute_dtype,
                                     tm=tm, tn=tn, tk=tk)


# --------------------------------------------------------------------------
# Init + reference + demo
# --------------------------------------------------------------------------
def init_params(key, n_channels_in, n_channels_out, in_features, out_features):
    """Kaiming-uniform-ish init mirroring reset_parameters (exact scheme is
    irrelevant to the kernel; values only feed the numerical check)."""
    kw, kb = jax.random.split(key)
    fan_in = n_channels_out * in_features * out_features
    bound = 1.0 / jnp.sqrt(fan_in)
    weight = jax.random.uniform(
        kw, (n_channels_in, n_channels_out, in_features, out_features),
        jnp.float32, -bound, bound)
    bias = jax.random.uniform(
        kb, (n_channels_out, out_features), jnp.float32, -bound, bound)
    return weight, bias


def _reference_f32(x, weight, bias):
    out = jnp.einsum('ijk,jlkm->ilm', x, weight,
                     precision=jax.lax.Precision.HIGHEST)
    return out + bias[None]


def _reference_bf16(x, weight, bias):
    """Reference at the kernel's accuracy contract: bf16 operands, f32 acc."""
    out = jnp.einsum('ijk,jlkm->ilm',
                     x.astype(jnp.bfloat16), weight.astype(jnp.bfloat16),
                     preferred_element_type=jnp.float32)
    return out + bias[None].astype(jnp.float32)


if __name__ == "__main__":
    # Small shapes consistent with the module: K = Cin*Fin = 128, N = Cout*Fout = 512.
    B, Cin, Cout, Fin, Fout = 4, 4, 8, 32, 64

    key = jax.random.PRNGKey(0)
    kp, kx = jax.random.split(key)
    weight, bias = init_params(kp, Cin, Cout, Fin, Fout)
    x = jax.random.normal(kx, (B, Cin, Fin), jnp.float32)

    # One-time layout plumbing + bf16 cast, hoisted out of the jitted forward.
    w2, b2 = prepare_params(weight, bias)

    fwd = jax.jit(functools.partial(
        multichannel_linear_fused, n_channels_out=Cout, out_features=Fout))
    out = fwd(x, w2, b2)
    jax.block_until_ready(out)

    assert out.shape == (B, Cout, Fout)

    # Accuracy contract: bf16 operands, f32 accumulation.
    ref_bf16 = _reference_bf16(x, weight, bias)
    assert jnp.allclose(out, ref_bf16, atol=2e-3, rtol=0.0), (
        "vs bf16 ref:", float(jnp.max(jnp.abs(out - ref_bf16))))

    # Sanity vs the exact f32 reference (bf16-rounding-level tolerance).
    ref_f32 = _reference_f32(x, weight, bias)
    assert jnp.allclose(out, ref_f32, atol=1e-2, rtol=0.0), (
        "vs f32 ref:", float(jnp.max(jnp.abs(out - ref_f32))))

    print("KERNEL_OK")
</pallas_src>

<mosaic_0001>
module attributes {stable_mosaic.version = 11 : i64} {
  func.func @_mcl_kernel_direct(%arg0: i32, %arg1: i32, %arg2: i32, %arg3: memref<4x128xbf16, #tpu.memory_space<vmem>>, %arg4: memref<128x256xbf16, #tpu.memory_space<vmem>>, %arg5: memref<1x256xf32, #tpu.memory_space<vmem>>, %arg6: memref<4x256xf32, #tpu.memory_space<vmem>>) attributes {dimension_semantics = [#tpu.dimension_semantics<parallel>, #tpu.dimension_semantics<parallel>, #tpu.dimension_semantics<arbitrary>], iteration_bounds = array<i64: 1, 2, 1>, scalar_prefetch = 0 : i64, scratch_operands = 0 : i64, tpu.core_type = #tpu.core_type<tc>, window_params = [{transform_indices = @transform_0, window_bounds = array<i64: 4, 128>}, {transform_indices = @transform_1, window_bounds = array<i64: 128, 256>}, {transform_indices = @transform_2, window_bounds = array<i64: 1, 256>}, {transform_indices = @transform_3, window_bounds = array<i64: 4, 256>}]} {
    %c0_i32 = arith.constant 0 : i32
    %0 = arith.cmpi eq, %arg2, %c0_i32 : i32
    %1 = arith.extui %0 : i1 to i32
    %c0_i32_0 = arith.constant 0 : i32
    %2 = arith.cmpi ne, %1, %c0_i32_0 : i32
    scf.if %2 {
      %c0_8 = arith.constant 0 : index
      %c0_9 = arith.constant 0 : index
      %9 = vector.load %arg5[%c0_8, %c0_9] : memref<1x256xf32, #tpu.memory_space<vmem>>, vector<1x256xf32>
      %10 = vector.shape_cast %9 : vector<1x256xf32> to vector<1x256xf32>
      %11 = vector.broadcast %10 : vector<1x256xf32> to vector<4x256xf32>
      %c0_10 = arith.constant 0 : index
      %c0_11 = arith.constant 0 : index
      %12 = vector.load %arg6[%c0_10, %c0_11] : memref<4x256xf32, #tpu.memory_space<vmem>>, vector<4x256xf32>
      tpu.vector_store %arg6[%c0_10, %c0_11], %11 {strides = array<i32>} : memref<4x256xf32, #tpu.memory_space<vmem>>, vector<4x256xf32>,
    } else {
    }
    %c0 = arith.constant 0 : index
    %c0_1 = arith.constant 0 : index
    %3 = vector.load %arg6[%c0, %c0_1] : memref<4x256xf32, #tpu.memory_space<vmem>>, vector<4x256xf32>
    %c0_2 = arith.constant 0 : index
    %c0_3 = arith.constant 0 : index
    %4 = vector.load %arg3[%c0_2, %c0_3] : memref<4x128xbf16, #tpu.memory_space<vmem>>, vector<4x128xbf16>
    %c0_4 = arith.constant 0 : index
    %c0_5 = arith.constant 0 : index
    %5 = vector.load %arg4[%c0_4, %c0_5] : memref<128x256xbf16, #tpu.memory_space<vmem>>, vector<128x256xbf16>
    %cst = arith.constant dense<0.000000e+00> : vector<4x256xf32>
    %6 = tpu.matmul %4, %5, %cst {dimension_numbers = #tpu.dot_dimension_numbers<[1], [0], [0], [1], [0, 0, 1, 1], [], []>} : vector<4x128xbf16>, vector<128x256xbf16>, vector<4x256xf32> -> vector<4x256xf32>
    %7 = arith.addf %3, %6 : vector<4x256xf32>
    %c0_6 = arith.constant 0 : index
    %c0_7 = arith.constant 0 : index
    %8 = vector.load %arg6[%c0_6, %c0_7] : memref<4x256xf32, #tpu.memory_space<vmem>>, vector<4x256xf32>
    tpu.vector_store %arg6[%c0_6, %c0_7], %7 {strides = array<i32>} : memref<4x256xf32, #tpu.memory_space<vmem>>, vector<4x256xf32>,
    return
  }
  func.func @transform_0(%arg0: i32, %arg1: i32, %arg2: i32) -> (i32, i32) {
    %c0_i32 = arith.constant 0 : i32
    return %arg0, %arg2 : i32, i32
  }
  func.func @transform_1(%arg0: i32, %arg1: i32, %arg2: i32) -> (i32, i32) {
    %c0_i32 = arith.constant 0 : i32
    return %arg2, %arg1 : i32, i32
  }
  func.func @transform_2(%arg0: i32, %arg1: i32, %arg2: i32) -> (i32, i32) {
    %c0_i32 = arith.constant 0 : i32
    %c0_i32_0 = arith.constant 0 : i32
    return %c0_i32, %arg1 : i32, i32
  }
  func.func @transform_3(%arg0: i32, %arg1: i32, %arg2: i32) -> (i32, i32) {
    %c0_i32 = arith.constant 0 : i32
    return %arg0, %arg1 : i32, i32
  }
}

</mosaic_0001>

<llo_original>
// kernel: multichannel_linear_fused.1
$region0: #{multichannel_linear_fused.1}
  #allocation0 [shape = 'u32[]', space=smem, size = 0x4, offset = 0x4, fixed_abs, tag = 'smem constant byte address 0x4 - core index']
  #allocation1 [shape = 'u32[72,128]{1,0:T(1,128)}', space=vmem, size = 0x9000, scoped, tag = 'internal scratch']
  %s0 = inlined_call_operand.vmem [shape: bf16[4,128], index: 0, kind: input, shape index: {}]
  %s1 = inlined_call_operand.hbm [shape: bf16[128,512], index: 1, kind: input, shape index: {}]
  %s2 = inlined_call_operand.vmem [shape: f32[1,512], index: 2, kind: input, shape index: {}]
  %s3 = inlined_call_operand.vmem [shape: f32[4,512], index: 3, kind: output, shape index: {}]
  %s4 = sld [smem:[#allocation0]]
  $region53: #{multichannel_linear_fused.1} parent=0
    _
  %s6 = ssub.s32 1, %s4
  %s7 = scalar_select 0, %s6, %s4
  $region1: #{multichannel_linear_fused.1} parent=0
    #allocation2 [shape = 'u8[131072]{0}', space=vmem, size = 0x20000, scoped, tag = 'input window, operand 1']
    #allocation3 [shape = 's32[2]{0}', space=sflag, size = 0x8, scoped, tag = 'scoped memory for multichannel_linear_fused.1']
    %8 = vsyncpa [#allocation3], 0
    %s9 = scalar_lea.sflag [#allocation3], 1
    %10 = vsyncpa %s9, 0
    loop: start=0, step=1, limit=4
    $region2: #{multichannel_linear_fused.1} parent=1 // loop_pre_header
      _
    $region3: #{multichannel_linear_fused.1} parent=1 // loop_header
      %s12 = sphi 0, %s16
      %p13 = scmp.ge.s32.totalorder %s12, 4
      %s19 = sphi 0, %s38
      %s20 = sphi 0, %s34
      %s21 = sphi 0, %s30
      %s22 = sphi 0, %s19
      %s23 = sphi 0, %s20
      %s24 = sphi 0, %s21
      %s25 = sphi 0, %s22
      %s26 = sphi 0, %s23
      %s27 = sphi 0, %s24
      %s43 = sphi 0, %s45
      %s46 = sphi 0, %s43
      %s47 = sphi 0, %s46
      %s63 = sphi 0, %s47
      %s71 = sphi 0, %s73
      %s74 = sphi 0, %s71
      %s75 = sphi 0, %s74
      %s91 = sphi 0, %s75
      %s97 = sphi 0, %s99
      %s100 = sphi 0, %s97
      %s101 = sphi 0, %s100
      %s117 = sphi 0, %s101
      %s125 = sphi 0, %s127
      %s128 = sphi 0, %s125
      %s129 = sphi 0, %s128
      %s145 = sphi 0, %s129
    $region4: #{multichannel_linear_fused.1} parent=1 // loop_header_branch
      %15 = sbr.rel (%p13) target = $region8
    $region5: #{multichannel_linear_fused.1} parent=1 // loop_body
      %s17 = ssub.s32 %s12, 1
      %s18 = ssub.s32 %s12, 2
      %s28 = sadd.s32 1, %s21
      %p29 = scmp.ge.s32.totalorder %s28, 1
      %s30 = scalar_select %p29, 0, %s28
      %s31 = sadd.s32 1, %s20
      %s32 = scalar_select %p29, %s31, %s20
      %p33 = scmp.ge.s32.totalorder %s32, 2
      %s34 = scalar_select %p33, 0, %s32
      %s35 = sadd.s32 1, %s19
      %s36 = scalar_select %p33, %s35, %s19
      %p37 = scmp.ge.s32.totalorder %s36, 1
      %s38 = scalar_select %p37, 0, %s36
      %s39 = ssub.s32 %s19, %s38
      %s40 = ssub.s32 %s21, %s30
      %s41 = sor.u32 %s39, %s40
      %p42 = scmp.eq.s32.totalorder %s41, 0
      %s44 = sadd.s32 %s43, 1
      %s45 = scalar_select %p42, %s43, %s44
      %p48 = pneg %p42
      %p49 = scmp.eq.s32.totalorder %s12, 1
      %p50 = por %p48, %p49
      %p51 = scmp.ne.s32.totalorder %s43, %s46
      %p52 = scmp.eq.s32.totalorder %s12, 0
      %p53 = por %p51, %p52
      %p54 = scmp.ne.s32.totalorder %s43, %s46
      %p55 = scmp.eq.s32.totalorder %s17, 1
      %p56 = por %p54, %p55
      %p57 = scmp.ne.s32.totalorder %s46, %s47
      %p58 = scmp.eq.s32.totalorder %s17, 0
      %p59 = por %p57, %p58
      %p60 = scmp.ne.s32.totalorder %s46, %s47
      %p61 = scmp.eq.s32.totalorder %s18, 1
      %p62 = por %p60, %p61
      %p64 = scmp.ne.s32.totalorder %s47, %s63
      %p65 = scmp.eq.s32.totalorder %s18, 0
      %p66 = por %p64, %p65
      %s67 = ssub.s32 %s21, %s30
      %s68 = ssub.s32 %s20, %s34
      %s69 = sor.u32 %s67, %s68
      %p70 = scmp.eq.s32.totalorder %s69, 0
      %s72 = sadd.s32 %s71, 1
      %s73 = scalar_select %p70, %s71, %s72
      %p76 = pneg %p70
      %p77 = scmp.eq.s32.totalorder %s12, 1
      %p78 = por %p76, %p77
      %p79 = scmp.ne.s32.totalorder %s71, %s74
      %p80 = scmp.eq.s32.totalorder %s12, 0
      %p81 = por %p79, %p80
      %p82 = scmp.ne.s32.totalorder %s71, %s74
      %p83 = scmp.eq.s32.totalorder %s17, 1
      %p84 = por %p82, %p83
      %p85 = scmp.ne.s32.totalorder %s74, %s75
      %p86 = scmp.eq.s32.totalorder %s17, 0
      %p87 = por %p85, %p86
      %p88 = scmp.ne.s32.totalorder %s74, %s75
      %p89 = scmp.eq.s32.totalorder %s18, 1
      %p90 = por %p88, %p89
      %p92 = scmp.ne.s32.totalorder %s75, %s91
      %p93 = scmp.eq.s32.totalorder %s18, 0
      %p94 = por %p92, %p93
      %s95 = ssub.s32 %s20, %s34
      %p96 = scmp.eq.s32.totalorder %s95, 0
      %s98 = sadd.s32 %s97, 1
      %s99 = scalar_select %p96, %s97, %s98
      %p102 = pneg %p96
      %p103 = scmp.eq.s32.totalorder %s12, 1
      %p104 = por %p102, %p103
      %p105 = scmp.ne.s32.totalorder %s97, %s100
      %p106 = scmp.eq.s32.totalorder %s12, 0
      %p107 = por %p105, %p106
      %p108 = scmp.ne.s32.totalorder %s97, %s100
      %p109 = scmp.eq.s32.totalorder %s17, 1
      %p110 = por %p108, %p109
      %p111 = scmp.ne.s32.totalorder %s100, %s101
      %p112 = scmp.eq.s32.totalorder %s17, 0
      %p113 = por %p111, %p112
      %p114 = scmp.ne.s32.totalorder %s100, %s101
      %p115 = scmp.eq.s32.totalorder %s18, 1
      %p116 = por %p114, %p115
      %p118 = scmp.ne.s32.totalorder %s101, %s117
      %p119 = scmp.eq.s32.totalorder %s18, 0
      %p120 = por %p118, %p119
      %s121 = ssub.s32 %s19, %s38
      %s122 = ssub.s32 %s20, %s34
      %s123 = sor.u32 %s121, %s122
      %p124 = scmp.eq.s32.totalorder %s123, 0
      %s126 = sadd.s32 %s125, 1
      %s127 = scalar_select %p124, %s125, %s126
      %p130 = pneg %p124
      %p131 = scmp.eq.s32.totalorder %s12, 1
      %p132 = por %p130, %p131
      %p133 = scmp.ne.s32.totalorder %s125, %s128
      %p134 = scmp.eq.s32.totalorder %s12, 0
      %p135 = por %p133, %p134
      %p136 = scmp.ne.s32.totalorder %s125, %s128
      %p137 = scmp.eq.s32.totalorder %s17, 1
      %p138 = por %p136, %p137
      %p139 = scmp.ne.s32.totalorder %s128, %s129
      %p140 = scmp.eq.s32.totalorder %s17, 0
      %p141 = por %p139, %p140
      %p142 = scmp.ne.s32.totalorder %s128, %s129
      %p143 = scmp.eq.s32.totalorder %s18, 1
      %p144 = por %p142, %p143
      %p146 = scmp.ne.s32.totalorder %s129, %s145
      %p147 = scmp.eq.s32.totalorder %s18, 0
      %p148 = por %p146, %p147
      %p149 = scmp.le.s32.totalorder 1, %s12
      %p150 = scmp.lt.s32.totalorder %s12, 3
      %p151 = pnand %p149, %p150
      %p152 = pneg %p151
      // Predicated region
      $region9: #{multichannel_linear_fused.1} parent=5 // pred_check
        _
      $region10: #{multichannel_linear_fused.1} parent=5 // pred_check_branch
        %154 = sbr.rel (%p151) target = $region12
      $region11: #{multichannel_linear_fused.1} parent=5 // pred_region
        %s155 = ssub.s32 %s12, 1
        // Predicated region
        $region13: #{multichannel_linear_fused.1} parent=11 // pred_check
          %p156 = pneg %p59
        $region14: #{multichannel_linear_fused.1} parent=11 // pred_check_branch
          %158 = sbr.rel (%p156) target = $region16
        $region15: #{multichannel_linear_fused.1} parent=11 // pred_region
          %p159 = scmp.lt.s32.totalorder %s22, 0
          %s160 = scalar_select %p159, %s22, 0
          %p161 = scmp.lt.s32.totalorder %s24, 0
          %s162 = scalar_select %p161, %s24, 0
          %s163 = sadd.s32 %s162, %s160
          %s164 = smul.addr %s163, 2
          %s165 = scalar_lea.vmem %s0, %s164
        $region16: #{multichannel_linear_fused.1} parent=11 // pred_fallthru
          _
      $region12: #{multichannel_linear_fused.1} parent=5 // pred_fallthru
        _
      %p166 = scmp.lt.s32.totalorder %s12, 2
      // Predicated region
      $region17: #{multichannel_linear_fused.1} parent=5 // pred_check
        %p167 = pneg %p166
      $region18: #{multichannel_linear_fused.1} parent=5 // pred_check_branch
        %169 = sbr.rel (%p167) target = $region20
      $region19: #{multichannel_linear_fused.1} parent=5 // pred_region
        // Predicated region
        $region21: #{multichannel_linear_fused.1} parent=19 // pred_check
          %p170 = pneg %p81
        $region22: #{multichannel_linear_fused.1} parent=19 // pred_check_branch
          %172 = sbr.rel (%p170) target = $region24
        $region23: #{multichannel_linear_fused.1} parent=19 // pred_region
          %s173 = sand.u32 %s71, 1
          %s174 = scalar_lea.sflag [#allocation3], %s173
          %s175 = sand.u32 %s71, 1
          %s176 = smul.addr %s175, 128
          %s177 = scalar_lea.vmem [#allocation2], %s176
          %s178 = smul.u32 16, %s21
          %s179 = smul.u32 2, %s20
          %181 = vsyncadd %s174, 0
          %s182 = smul.addr %s178, 4
          %s183 = sadd.s32 %s179, %s182
          %s184 = smul.addr %s183, 4
          %s185 = scalar_lea.hbm %s1, %s184
          %s186 = sshll.u32 %s185, 4
          %s187 = int_to_ptr.hbm [resolvable:$true] %s186
          %s188 = sshll.u32 %s177, 4
          %s189 = int_to_ptr.vmem [resolvable:$true] %s188
          %194 = dma.hbm_to_vmem [thread:$0]  %s187, 2048, %s189, %s174, 256, 128, 8
        $region24: #{multichannel_linear_fused.1} parent=19 // pred_fallthru
          _
        // Predicated region
        $region25: #{multichannel_linear_fused.1} parent=19 // pred_check
          %p195 = pneg %p107
        $region26: #{multichannel_linear_fused.1} parent=19 // pred_check_branch
          %197 = sbr.rel (%p195) target = $region28
        $region27: #{multichannel_linear_fused.1} parent=19 // pred_region
          %s198 = smul.u32 2, %s20
          %p199 = scmp.lt.s32.totalorder %s198, 3
          %s200 = scalar_select %p199, %s198, 3
          %s201 = scalar_lea.vmem %s2, %s200
          %s202 = smul.u32 2, %s20
        $region28: #{multichannel_linear_fused.1} parent=19 // pred_fallthru
          _
      $region20: #{multichannel_linear_fused.1} parent=5 // pred_fallthru
        _
      %p203 = scmp.le.s32.totalorder 1, %s12
      %p204 = scmp.lt.s32.totalorder %s12, 3
      %p205 = pnand %p203, %p204
      %p206 = pneg %p205
      // Predicated region
      $region29: #{multichannel_linear_fused.1} parent=5 // pred_check
        _
      $region30: #{multichannel_linear_fused.1} parent=5 // pred_check_branch
        %208 = sbr.rel (%p205) target = $region32
      $region31: #{multichannel_linear_fused.1} parent=5 // pred_region
        %s209 = ssub.s32 %s12, 1
        %s210 = sand.u32 %s74, 1
        %s211 = scalar_lea.sflag [#allocation3], %s210
        %s212 = sand.u32 %s74, 1
        %s213 = smul.addr %s212, 128
        %s214 = scalar_lea.vmem [#allocation2], %s213
        // Predicated region
        $region33: #{multichannel_linear_fused.1} parent=31 // pred_check
          %p215 = pneg %p87
        $region34: #{multichannel_linear_fused.1} parent=31 // pred_check_branch
          %217 = sbr.rel (%p215) target = $region36
        $region35: #{multichannel_linear_fused.1} parent=31 // pred_region
          %219 = dma.done %s211, 2048
        $region36: #{multichannel_linear_fused.1} parent=31 // pred_fallthru
          _
        %p220 = scmp.lt.s32.totalorder %s22, 0
        %s221 = scalar_select %p220, %s22, 0
        %p222 = scmp.lt.s32.totalorder %s24, 0
        %s223 = scalar_select %p222, %s24, 0
        %s224 = sadd.s32 %s223, %s221
        %s225 = smul.addr %s224, 2
        %s226 = scalar_lea.vmem %s0, %s225
        %p227 = pneg %p59
        %p228 = pneg %p56
        %s229 = sand.u32 %s74, 1
        %s230 = scalar_lea.sflag [#allocation3], %s229
        %s231 = sand.u32 %s74, 1
        %s232 = smul.addr %s231, 128
        %s233 = scalar_lea.vmem [#allocation2], %s232
        %p234 = pneg %p87
        %p235 = pneg %p84
        %s236 = smul.u32 2, %s23
        %p237 = scmp.lt.s32.totalorder %s236, 3
        %s238 = scalar_select %p237, %s236, 3
        %s239 = scalar_lea.vmem %s2, %s238
        %p240 = pneg %p113
        %p241 = pneg %p110
        %p242 = pneg %p141
        %p243 = pneg %p138
        %s244 = smul.u32 2, %s23
        %p245 = scmp.lt.s32.totalorder %s22, 0
        %s246 = scalar_select %p245, %s22, 0
        %p247 = scmp.lt.s32.totalorder %s244, 3
        %s248 = scalar_select %p247, %s244, 3
        %s249 = smul.addr %s246, 4
        %s250 = sadd.s32 %s248, %s249
        %s251 = smul.addr %s250, 4
        %s252 = scalar_lea.vmem %s3, %s251
        %p253 = scmp.lt.s32.totalorder %s22, 0
        %s254 = scalar_select %p253, %s22, 0
        %p255 = scmp.lt.s32.totalorder %s24, 0
        %s256 = scalar_select %p255, %s24, 0
        %s257 = sadd.s32 %s256, %s254
        %s258 = smul.addr %s257, 2
        %s259 = scalar_lea.vmem %s0, %s258
        %s260 = smul.u32 16, %s24
        %s261 = smul.u32 2, %s23
        %s262 = smul.u32 2, %s23
        %p263 = scmp.lt.s32.totalorder %s262, 3
        %s264 = scalar_select %p263, %s262, 3
        %s265 = scalar_lea.vmem %s2, %s264
        %s266 = smul.u32 2, %s23
        %s267 = smul.u32 2, %s23
        %p268 = scmp.lt.s32.totalorder %s22, 0
        %s269 = scalar_select %p268, %s22, 0
        %p270 = scmp.lt.s32.totalorder %s267, 3
        %s271 = scalar_select %p270, %s267, 3
        %s272 = smul.addr %s269, 4
        %s273 = sadd.s32 %s271, %s272
        %s274 = smul.addr %s273, 4
        %s275 = scalar_lea.vmem %s3, %s274
        %s276 = smul.u32 2, %s23
        %p277 = scmp.eq.s32.totalorder %s24, 0
        // Predicated region
        $region37: #{multichannel_linear_fused.1} parent=31 // pred_check
          %p278 = pneg %p277
        $region38: #{multichannel_linear_fused.1} parent=31 // pred_check_branch
          %280 = sbr.rel (%p278) target = $region40
        $region39: #{multichannel_linear_fused.1} parent=31 // pred_region
          %v281 = vld [vmem:[%s265] sm:$0x3]
          %v283 = vperm.slane %v281, 0
          %v284 = vperm.slane %v281, 1
          %v285 = vrot.slane %v284, 4
          %vm286 = vcmask 1043456
          %v287 = vsel %vm286, %v283, %v285
          %289 = vst [vmem:[%s275] sm:$0xff] %v287
        $region40: #{multichannel_linear_fused.1} parent=31 // pred_fallthru
          _
        %v290 = vld [vmem:[%s275] sm:$0xff]
        %v291 = vld [vmem:[%s259] sm:$0x3]
        %v292 = vld [vmem:[%s214] sm:$0xff]
        %v293 = vld [vmem:[%s214 + $0x8] sm:$0xff]
        %v294 = vld [vmem:[%s214 + $0x10] sm:$0xff]
        %v295 = vld [vmem:[%s214 + $0x18] sm:$0xff]
        %v296 = vld [vmem:[%s214 + $0x20] sm:$0xff]
        %v297 = vld [vmem:[%s214 + $0x28] sm:$0xff]
        %v298 = vld [vmem:[%s214 + $0x30] sm:$0xff]
        %v299 = vld [vmem:[%s214 + $0x38] sm:$0xff]
        %v300 = vld [vmem:[%s214 + $0x40] sm:$0xff]
        %v301 = vld [vmem:[%s214 + $0x48] sm:$0xff]
        %v302 = vld [vmem:[%s214 + $0x50] sm:$0xff]
        %v303 = vld [vmem:[%s214 + $0x58] sm:$0xff]
        %v304 = vld [vmem:[%s214 + $0x60] sm:$0xff]
        %v305 = vld [vmem:[%s214 + $0x68] sm:$0xff]
        %v306 = vld [vmem:[%s214 + $0x70] sm:$0xff]
        %v307 = vld [vmem:[%s214 + $0x78] sm:$0xff]
        %v324 = vunpack.c.l.b16 %v292
        %v325 = vunpack.c.h.b16 %v292
        %v326 = vunpack.c.l.b16 %v293
        %v327 = vunpack.c.h.b16 %v293
        %v328 = vunpack.c.l.b16 %v294
        %v329 = vunpack.c.h.b16 %v294
        %v330 = vunpack.c.l.b16 %v295
        %v331 = vunpack.c.h.b16 %v295
        %v332 = vunpack.c.l.b16 %v296
        %v333 = vunpack.c.h.b16 %v296
        %v334 = vunpack.c.l.b16 %v297
        %v335 = vunpack.c.h.b16 %v297
        %v336 = vunpack.c.l.b16 %v298
        %v337 = vunpack.c.h.b16 %v298
        %v338 = vunpack.c.l.b16 %v299
        %v339 = vunpack.c.h.b16 %v299
        %v340 = vunpack.c.l.b16 %v300
        %v341 = vunpack.c.h.b16 %v300
        %v342 = vunpack.c.l.b16 %v301
        %v343 = vunpack.c.h.b16 %v301
        %v344 = vunpack.c.l.b16 %v302
        %v345 = vunpack.c.h.b16 %v302
        %v346 = vunpack.c.l.b16 %v303
        %v347 = vunpack.c.h.b16 %v303
        %v348 = vunpack.c.l.b16 %v304
        %v349 = vunpack.c.h.b16 %v304
        %v350 = vunpack.c.l.b16 %v305
        %v351 = vunpack.c.h.b16 %v305
        %v352 = vunpack.c.l.b16 %v306
        %v353 = vunpack.c.h.b16 %v306
        %v354 = vunpack.c.l.b16 %v307
        %v355 = vunpack.c.h.b16 %v307
        %v356 = vpack.c.b16 %v326, %v324
        %v357 = vpack.c.b16 %v327, %v325
        %v358 = vpack.c.b16 %v330, %v328
        %v359 = vpack.c.b16 %v331, %v329
        %v360 = vpack.c.b16 %v334, %v332
        %v361 = vpack.c.b16 %v335, %v333
        %v362 = vpack.c.b16 %v338, %v336
        %v363 = vpack.c.b16 %v339, %v337
        %v364 = vpack.c.b16 %v342, %v340
        %v365 = vpack.c.b16 %v343, %v341
        %v366 = vpack.c.b16 %v346, %v344
        %v367 = vpack.c.b16 %v347, %v345
        %v368 = vpack.c.b16 %v350, %v348
        %v369 = vpack.c.b16 %v351, %v349
        %v370 = vpack.c.b16 %v354, %v352
        %v371 = vpack.c.b16 %v355, %v353
        %388 = vmatpush.bf16.msra.mxu0 %v370
        %389 = vmatpush.bf16.msra.mxu0 %v368
        %390 = vmatpush.bf16.msra.mxu0 %v366
        %391 = vmatpush.bf16.msra.mxu0 %v364
        %392 = vmatpush.bf16.msra.mxu0 %v362
        %393 = vmatpush.bf16.msra.mxu0 %v360
        %394 = vmatpush.bf16.msra.mxu0 %v358
        %395 = vmatpush.bf16.msra.mxu0 %v356
        %396 = vmatmul.bf16.gmra.mxu0 %v291
        %v397 = vpop.f32.mrf.mxu0
        %v398 = vadd.f32 0.0, %v397
        %v399 = vpop.f32.mrf.mxu0
        %400 = vdwg.mxu0
        %401 = vmatpush.bf16.msra.mxu0 %v371
        %402 = vmatpush.bf16.msra.mxu0 %v369
        %403 = vmatpush.bf16.msra.mxu0 %v367
        %404 = vmatpush.bf16.msra.mxu0 %v365
        %405 = vmatpush.bf16.msra.mxu0 %v363
        %406 = vmatpush.bf16.msra.mxu0 %v361
        %407 = vmatpush.bf16.msra.mxu0 %v359
        %408 = vmatpush.bf16.msra.mxu0 %v357
        %409 = vmatmul.bf16.gmra.mxu0 %v291
        %v410 = vpop.f32.mrf.mxu0
        %v411 = vadd.f32 0.0, %v410
        %v412 = vpop.f32.mrf.mxu0
        %413 = vdwg.mxu0
        %v416 = vrot.slane %v411, 4
        %vm417 = vcmask 1043456
        %v418 = vsel %vm417, %v398, %v416
        %v420 = vadd.f32 %v290, %v418
        %421 = vst [vmem:[%s275] sm:$0xff] %v420
        %s422 = smul.u32 2, %s23
        %p423 = scmp.lt.s32.totalorder %s22, 0
        %s424 = scalar_select %p423, %s22, 0
        %p425 = scmp.lt.s32.totalorder %s422, 3
        %s426 = scalar_select %p425, %s422, 3
        %s427 = smul.addr %s424, 4
        %s428 = sadd.s32 %s426, %s427
        %s429 = smul.addr %s428, 4
        %s430 = scalar_lea.vmem %s3, %s429
        // Predicated region
        $region41: #{multichannel_linear_fused.1} parent=31 // pred_check
          %p431 = pneg %p138
        $region42: #{multichannel_linear_fused.1} parent=31 // pred_check_branch
          %433 = sbr.rel (%p431) target = $region44
        $region43: #{multichannel_linear_fused.1} parent=31 // pred_region
          %s434 = smul.u32 2, %s23
        $region44: #{multichannel_linear_fused.1} parent=31 // pred_fallthru
          _
      $region32: #{multichannel_linear_fused.1} parent=5 // pred_fallthru
        _
      %p435 = scmp.le.s32.totalorder 2, %s12
      // Predicated region
      $region45: #{multichannel_linear_fused.1} parent=5 // pred_check
        %p436 = pneg %p435
      $region46: #{multichannel_linear_fused.1} parent=5 // pred_check_branch
        %438 = sbr.rel (%p436) target = $region48
      $region47: #{multichannel_linear_fused.1} parent=5 // pred_region
        %s439 = ssub.s32 %s12, 2
        // Predicated region
        $region49: #{multichannel_linear_fused.1} parent=47 // pred_check
          %p440 = pneg %p144
        $region50: #{multichannel_linear_fused.1} parent=47 // pred_check_branch
          %442 = sbr.rel (%p440) target = $region52
        $region51: #{multichannel_linear_fused.1} parent=47 // pred_region
          %s443 = smul.u32 2, %s26
          %p444 = scmp.lt.s32.totalorder %s25, 0
          %s445 = scalar_select %p444, %s25, 0
          %p446 = scmp.lt.s32.totalorder %s443, 3
          %s447 = scalar_select %p446, %s443, 3
          %s448 = smul.addr %s445, 4
          %s449 = sadd.s32 %s447, %s448
          %s450 = smul.addr %s449, 4
          %s451 = scalar_lea.vmem %s3, %s450
        $region52: #{multichannel_linear_fused.1} parent=47 // pred_fallthru
          _
      $region48: #{multichannel_linear_fused.1} parent=5 // pred_fallthru
        _
    $region6: #{multichannel_linear_fused.1} parent=1 // loop_footer
      %s16 = sadd.s32 1, %s12
    $region7: #{multichannel_linear_fused.1} parent=1 // loop_footer_branch
      %11 = sbr.rel target = $region3
    $region8: #{multichannel_linear_fused.1} parent=1 // loop_exit
      _
    %452 = vsyncpa [#allocation3], 1
    %s453 = scalar_lea.sflag [#allocation3], 1
    %454 = vsyncpa %s453, 1

</llo_original>
